<compile_context>
chip_gen: v7x
topology: tpu7x:2x2x1
jax: 0.10.0
libtpu: 0.0.40
codegen_flags: <defaults>
</compile_context>

<pallas_src>
import functools

import jax
import jax.numpy as jnp
from jax.experimental import pallas as pl
from jax.experimental.pallas import tpu as pltpu


def _round_up(x, m):
    return ((x + m - 1) // m) * m


def decoder_kernel(z_ref, w1_ref, b1_ref, w2_ref, b2_ref, w3_ref, b3_ref, o_ref,
                   *, use_bf16=False):
    # Optional bf16 operands (f32 accumulation) to cut MXU passes ~3x on v5e.
    op_dt = jnp.bfloat16 if use_bf16 else jnp.float32

    z = z_ref[...].astype(op_dt)

    h1 = jnp.dot(z, w1_ref[...].astype(op_dt),
                 preferred_element_type=jnp.float32) + b1_ref[...]
    h1 = jnp.maximum(h1, 0.0)

    h2 = jnp.dot(h1.astype(op_dt), w2_ref[...].astype(op_dt),
                 preferred_element_type=jnp.float32) + b2_ref[...]
    h2 = jnp.maximum(h2, 0.0)

    h3 = jnp.dot(h2.astype(op_dt), w3_ref[...].astype(op_dt),
                 preferred_element_type=jnp.float32) + b3_ref[...]
    o_ref[...] = h3.astype(o_ref.dtype)


def prepare_decoder_params(params):
    """One-time lane-dense padding of hidden widths to multiples of 128.

    Zero-padded bias/weight columns produce ReLU(0)=0 activations and the
    matching zero-padded weight rows contribute nothing, so the math is
    bit-identical to the unpadded network.  Call once; reuse across forwards.
    """
    w1, b1, w2, b2, w3, b3 = params
    H1, H2 = w1.shape[1], w2.shape[1]
    H1p, H2p = _round_up(H1, 128), _round_up(H2, 128)
    if H1p != H1:
        w1 = jnp.pad(w1, ((0, 0), (0, H1p - H1)))
        b1 = jnp.pad(b1, ((0, 0), (0, H1p - H1)))
        w2 = jnp.pad(w2, ((0, H1p - H1), (0, 0)))   # zero rows -> no contribution
    if H2p != H2:
        w2 = jnp.pad(w2, ((0, 0), (0, H2p - H2)))
        b2 = jnp.pad(b2, ((0, 0), (0, H2p - H2)))
        w3 = jnp.pad(w3, ((0, H2p - H2), (0, 0)))
    return (w1, b1, w2, b2, w3, b3)


def decoder_forward(z, prepared_params, *, tm=2048, use_bf16=False):
    """z: [B, latent_dims] float32 -> [B, 256] float32.

    prepared_params: output of prepare_decoder_params().
    tm: requested batch tile (multiple of 8).  Sweep 1024/2048/4096 on large
        batches; capped at 4096 (v7x 64 MiB VMEM budget incl. intermediates).
        Raise pltpu.CompilerParams(vmem_limit_bytes=...) if sweeping higher on
        the 128 MiB parts (v5e/v6e).
    use_bf16: opt-in bf16 operands (f32 accumulation); only when ~1e-2
        tolerance is acceptable.
    """
    w1, b1, w2, b2, w3, b3 = prepared_params
    B, L = z.shape
    H1p, H2p, H3 = w1.shape[1], w2.shape[1], w3.shape[1]
    assert H1p % 128 == 0 and H2p % 128 == 0 and H3 % 128 == 0, (
        "pass params through prepare_decoder_params() first")

    # ---- batch tile selection
    tm = min(int(tm), 4096)                          # v7x VMEM-safe ceiling
    tm = min(tm, _round_up(pl.cdiv(B, 2), 8))        # >=2 steps when possible (v7x megacore)
    tm = max(8, _round_up(tm, 8))                    # sublane multiple

    grid = (pl.cdiv(B, tm),)                         # partial last block masked by Pallas

    in_specs = [
        pl.BlockSpec((tm, L), lambda i: (i, 0)),      # z tile (batch-tiled)
        # Weights/biases: constant block index -> fetched once, resident in VMEM.
        # TODO(synk): pipeline_mode=pl.Buffered(1) would halve their VMEM
        # footprint; only matters when pushing tm toward the v7x VMEM ceiling.
        pl.BlockSpec((L, H1p), lambda i: (0, 0)),     # w1
        pl.BlockSpec((1, H1p), lambda i: (0, 0)),     # b1
        pl.BlockSpec((H1p, H2p), lambda i: (0, 0)),   # w2
        pl.BlockSpec((1, H2p), lambda i: (0, 0)),     # b2
        pl.BlockSpec((H2p, H3), lambda i: (0, 0)),    # w3
        pl.BlockSpec((1, H3), lambda i: (0, 0)),      # b3
    ]
    out_spec = pl.BlockSpec((tm, H3), lambda i: (i, 0))

    weight_bytes = 4 * (L * H1p + H1p + H1p * H2p + H2p + H2p * H3 + H3)
    cost = pl.CostEstimate(
        flops=2 * B * (L * H1p + H1p * H2p + H2p * H3),
        transcendentals=0,
        bytes_accessed=4 * B * (L + H3) + weight_bytes,
    )

    return pl.pallas_call(
        functools.partial(decoder_kernel, use_bf16=use_bf16),
        out_shape=jax.ShapeDtypeStruct((B, H3), jnp.float32),
        grid_spec=pltpu.PrefetchScalarGridSpec(
            num_scalar_prefetch=0,
            grid=grid,
            in_specs=in_specs,
            out_specs=out_spec,
        ),
        compiler_params=pltpu.CompilerParams(
            # batch axis is fully independent -> shard across TensorCores (v7x)
            dimension_semantics=("parallel",),
        ),
        cost_estimate=cost,
    )(z, w1, b1, w2, b2, w3, b3)


def init_decoder_params(key, latent_dims):
    """Deterministic synthetic init, shapes matching the nn.Linear layers."""
    k1, k2, k3, k4, k5, k6 = jax.random.split(key, 6)
    # Stored as [in, out] (transposed vs PyTorch's [out, in]).
    w1 = jax.random.normal(k1, (latent_dims, 64), jnp.float32) * (1.0 / jnp.sqrt(latent_dims))
    b1 = jax.random.normal(k2, (1, 64), jnp.float32) * 0.01
    w2 = jax.random.normal(k3, (64, 128), jnp.float32) * (1.0 / jnp.sqrt(64.0))
    b2 = jax.random.normal(k4, (1, 128), jnp.float32) * 0.01
    w3 = jax.random.normal(k5, (128, 256), jnp.float32) * (1.0 / jnp.sqrt(128.0))
    b3 = jax.random.normal(k6, (1, 256), jnp.float32) * 0.01
    return (w1, b1, w2, b2, w3, b3)


def decoder_reference(z, params):
    """Pure-JAX reference mirroring the PyTorch forward (unpadded params)."""
    w1, b1, w2, b2, w3, b3 = params
    h = jax.nn.relu(z @ w1 + b1)
    h = jax.nn.relu(h @ w2 + b2)
    return h @ w3 + b3


if __name__ == "__main__":
    key = jax.random.PRNGKey(0)
    k_z, k_p, k_z2 = jax.random.split(key, 3)

    latent_dims = 32
    batch = 8

    raw_params = init_decoder_params(k_p, latent_dims)
    params = prepare_decoder_params(raw_params)          # one-time padding

    # Small-shape check (tm auto-clamps to the batch).
    z = jax.random.normal(k_z, (batch, latent_dims), jnp.float32)
    out = jax.block_until_ready(decoder_forward(z, params))
    ref = decoder_reference(z, raw_params)
    assert out.shape == (batch, 256), out.shape
    assert jnp.allclose(out, ref, atol=1e-4, rtol=1e-4), "mismatch vs reference (small)"

    # Non-divisible batch + multi-step grid check (exercises the partial last
    # block: 20 rows, tm=16 -> 2 grid steps, 12 masked rows in step 1).
    z2 = jax.random.normal(k_z2, (20, latent_dims), jnp.float32)
    out2 = jax.block_until_ready(decoder_forward(z2, params, tm=16))
    ref2 = decoder_reference(z2, raw_params)
    assert out2.shape == (20, 256), out2.shape
    assert jnp.allclose(out2, ref2, atol=1e-4, rtol=1e-4), "mismatch vs reference (partial block)"

    # Opt-in bf16 operand path (loose tolerance; for v5e/v6e throughput).
    out_bf16 = jax.block_until_ready(decoder_forward(z, params, use_bf16=True))
    assert out_bf16.shape == (batch, 256), out_bf16.shape
    assert jnp.allclose(out_bf16, ref, atol=2e-1, rtol=5e-2), "mismatch vs reference (bf16)"

    print("KERNEL_OK")
</pallas_src>

<mosaic_0001>
module attributes {stable_mosaic.version = 11 : i64} {
  func.func @decoder_kernel(%arg0: i32, %arg1: memref<8x32xf32, #tpu.memory_space<vmem>>, %arg2: memref<32x128xf32, #tpu.memory_space<vmem>>, %arg3: memref<1x128xf32, #tpu.memory_space<vmem>>, %arg4: memref<128x128xf32, #tpu.memory_space<vmem>>, %arg5: memref<1x128xf32, #tpu.memory_space<vmem>>, %arg6: memref<128x256xf32, #tpu.memory_space<vmem>>, %arg7: memref<1x256xf32, #tpu.memory_space<vmem>>, %arg8: memref<8x256xf32, #tpu.memory_space<vmem>>) attributes {dimension_semantics = [#tpu.dimension_semantics<parallel>], iteration_bounds = array<i64: 1>, scalar_prefetch = 0 : i64, scratch_operands = 0 : i64, tpu.core_type = #tpu.core_type<tc>, window_params = [{transform_indices = @transform_0, window_bounds = array<i64: 8, 32>}, {pipeline_mode = #tpu.pipeline_mode<synchronous>, transform_indices = @transform_1, window_bounds = array<i64: 32, 128>}, {pipeline_mode = #tpu.pipeline_mode<synchronous>, transform_indices = @transform_2, window_bounds = array<i64: 1, 128>}, {pipeline_mode = #tpu.pipeline_mode<synchronous>, transform_indices = @transform_3, window_bounds = array<i64: 128, 128>}, {pipeline_mode = #tpu.pipeline_mode<synchronous>, transform_indices = @transform_4, window_bounds = array<i64: 1, 128>}, {pipeline_mode = #tpu.pipeline_mode<synchronous>, transform_indices = @transform_5, window_bounds = array<i64: 128, 256>}, {pipeline_mode = #tpu.pipeline_mode<synchronous>, transform_indices = @transform_6, window_bounds = array<i64: 1, 256>}, {transform_indices = @transform_7, window_bounds = array<i64: 8, 256>}]} {
    %c0 = arith.constant 0 : index
    %c0_0 = arith.constant 0 : index
    %0 = vector.load %arg1[%c0, %c0_0] : memref<8x32xf32, #tpu.memory_space<vmem>>, vector<8x32xf32>
    %c0_1 = arith.constant 0 : index
    %c0_2 = arith.constant 0 : index
    %1 = vector.load %arg2[%c0_1, %c0_2] : memref<32x128xf32, #tpu.memory_space<vmem>>, vector<32x128xf32>
    %cst = arith.constant dense<0.000000e+00> : vector<8x128xf32>
    %2 = tpu.matmul %0, %1, %cst {dimension_numbers = #tpu.dot_dimension_numbers<[1], [0], [0], [1], [0, 0, 1, 1], [], []>} : vector<8x32xf32>, vector<32x128xf32>, vector<8x128xf32> -> vector<8x128xf32>
    %c0_3 = arith.constant 0 : index
    %c0_4 = arith.constant 0 : index
    %3 = vector.load %arg3[%c0_3, %c0_4] : memref<1x128xf32, #tpu.memory_space<vmem>>, vector<1x128xf32>
    %4 = vector.broadcast %3 : vector<1x128xf32> to vector<8x128xf32>
    %5 = arith.addf %2, %4 : vector<8x128xf32>
    %cst_5 = arith.constant 0.000000e+00 : f32
    %6 = vector.broadcast %cst_5 : f32 to vector<8x128xf32>
    %7 = arith.maximumf %5, %6 : vector<8x128xf32>
    %c0_6 = arith.constant 0 : index
    %c0_7 = arith.constant 0 : index
    %8 = vector.load %arg4[%c0_6, %c0_7] : memref<128x128xf32, #tpu.memory_space<vmem>>, vector<128x128xf32>
    %cst_8 = arith.constant dense<0.000000e+00> : vector<8x128xf32>
    %9 = tpu.matmul %7, %8, %cst_8 {dimension_numbers = #tpu.dot_dimension_numbers<[1], [0], [0], [1], [0, 0, 1, 1], [], []>} : vector<8x128xf32>, vector<128x128xf32>, vector<8x128xf32> -> vector<8x128xf32>
    %c0_9 = arith.constant 0 : index
    %c0_10 = arith.constant 0 : index
    %10 = vector.load %arg5[%c0_9, %c0_10] : memref<1x128xf32, #tpu.memory_space<vmem>>, vector<1x128xf32>
    %11 = vector.broadcast %10 : vector<1x128xf32> to vector<8x128xf32>
    %12 = arith.addf %9, %11 : vector<8x128xf32>
    %cst_11 = arith.constant 0.000000e+00 : f32
    %13 = vector.broadcast %cst_11 : f32 to vector<8x128xf32>
    %14 = arith.maximumf %12, %13 : vector<8x128xf32>
    %c0_12 = arith.constant 0 : index
    %c0_13 = arith.constant 0 : index
    %15 = vector.load %arg6[%c0_12, %c0_13] : memref<128x256xf32, #tpu.memory_space<vmem>>, vector<128x256xf32>
    %cst_14 = arith.constant dense<0.000000e+00> : vector<8x256xf32>
    %16 = tpu.matmul %14, %15, %cst_14 {dimension_numbers = #tpu.dot_dimension_numbers<[1], [0], [0], [1], [0, 0, 1, 1], [], []>} : vector<8x128xf32>, vector<128x256xf32>, vector<8x256xf32> -> vector<8x256xf32>
    %c0_15 = arith.constant 0 : index
    %c0_16 = arith.constant 0 : index
    %17 = vector.load %arg7[%c0_15, %c0_16] : memref<1x256xf32, #tpu.memory_space<vmem>>, vector<1x256xf32>
    %18 = vector.broadcast %17 : vector<1x256xf32> to vector<8x256xf32>
    %19 = arith.addf %16, %18 : vector<8x256xf32>
    %c0_17 = arith.constant 0 : index
    %c0_18 = arith.constant 0 : index
    %20 = vector.load %arg8[%c0_17, %c0_18] : memref<8x256xf32, #tpu.memory_space<vmem>>, vector<8x256xf32>
    tpu.vector_store %arg8[%c0_17, %c0_18], %19 {strides = array<i32>} : memref<8x256xf32, #tpu.memory_space<vmem>>, vector<8x256xf32>,
    return
  }
  func.func @transform_0(%arg0: i32) -> (i32, i32) {
    %c0_i32 = arith.constant 0 : i32
    %c0_i32_0 = arith.constant 0 : i32
    return %arg0, %c0_i32 : i32, i32
  }
  func.func @transform_1(%arg0: i32) -> (i32, i32) {
    %c0_i32 = arith.constant 0 : i32
    %c0_i32_0 = arith.constant 0 : i32
    %c0_i32_1 = arith.constant 0 : i32
    return %c0_i32, %c0_i32_0 : i32, i32
  }
  func.func @transform_2(%arg0: i32) -> (i32, i32) {
    %c0_i32 = arith.constant 0 : i32
    %c0_i32_0 = arith.constant 0 : i32
    %c0_i32_1 = arith.constant 0 : i32
    return %c0_i32, %c0_i32_0 : i32, i32
  }
  func.func @transform_3(%arg0: i32) -> (i32, i32) {
    %c0_i32 = arith.constant 0 : i32
    %c0_i32_0 = arith.constant 0 : i32
    %c0_i32_1 = arith.constant 0 : i32
    return %c0_i32, %c0_i32_0 : i32, i32
  }
  func.func @transform_4(%arg0: i32) -> (i32, i32) {
    %c0_i32 = arith.constant 0 : i32
    %c0_i32_0 = arith.constant 0 : i32
    %c0_i32_1 = arith.constant 0 : i32
    return %c0_i32, %c0_i32_0 : i32, i32
  }
  func.func @transform_5(%arg0: i32) -> (i32, i32) {
    %c0_i32 = arith.constant 0 : i32
    %c0_i32_0 = arith.constant 0 : i32
    %c0_i32_1 = arith.constant 0 : i32
    return %c0_i32, %c0_i32_0 : i32, i32
  }
  func.func @transform_6(%arg0: i32) -> (i32, i32) {
    %c0_i32 = arith.constant 0 : i32
    %c0_i32_0 = arith.constant 0 : i32
    %c0_i32_1 = arith.constant 0 : i32
    return %c0_i32, %c0_i32_0 : i32, i32
  }
  func.func @transform_7(%arg0: i32) -> (i32, i32) {
    %c0_i32 = arith.constant 0 : i32
    %c0_i32_0 = arith.constant 0 : i32
    return %arg0, %c0_i32 : i32, i32
  }
}

</mosaic_0001>

<llo_original>
// kernel: tpu_custom_call.1
$region0: #{tpu_custom_call.1}
  #allocation0 [shape = 'u32[]', space=smem, size = 0x4, offset = 0x4, fixed_abs, tag = 'smem constant byte address 0x4 - core index']
  #allocation1 [shape = 'u32[144,128]{1,0:T(1,128)}', space=vmem, size = 0x12000, scoped, tag = 'internal scratch']
  %s0 = inlined_call_operand.hbm [shape: f32[8,32], index: 0, kind: input, shape index: {}]
  %s1 = inlined_call_operand.hbm [shape: f32[32,128], index: 1, kind: input, shape index: {}]
  %s2 = inlined_call_operand.vmem [shape: f32[1,128], index: 2, kind: input, shape index: {}]
  %s3 = inlined_call_operand.hbm [shape: f32[128,128], index: 3, kind: input, shape index: {}]
  %s4 = inlined_call_operand.vmem [shape: f32[1,128], index: 4, kind: input, shape index: {}]
  %s5 = inlined_call_operand.hbm [shape: f32[128,256], index: 5, kind: input, shape index: {}]
  %s6 = inlined_call_operand.vmem [shape: f32[1,256], index: 6, kind: input, shape index: {}]
  %s7 = inlined_call_operand.hbm [shape: f32[8,256], index: 7, kind: output, shape index: {}]
  %s8 = sld [smem:[#allocation0]]
  $region54: #{tpu_custom_call.1} parent=0
    _
  %s10 = ssub.s32 1, %s8
  %s11 = scalar_select 0, %s10, %s8
  $region1: #{tpu_custom_call.1} parent=0
    #allocation2 [shape = 'u8[4096]{0}', space=vmem, size = 0x1000, scoped, tag = 'input window, operand 0, single buffered']
    #allocation3 [shape = 's32[1]{0}', space=sflag, size = 0x4, scoped, tag = 'scoped memory for tpu_custom_call.1']
    #allocation4 [shape = 's32[1]{0}', space=sflag, size = 0x4, scoped, tag = 'scoped memory for tpu_custom_call.1']
    #allocation5 [shape = 'u8[16384]{0}', space=vmem, size = 0x4000, scoped, tag = 'input window, operand 1, single buffered']
    #allocation6 [shape = 's32[1]{0}', space=sflag, size = 0x4, scoped, tag = 'scoped memory for tpu_custom_call.1']
    #allocation7 [shape = 'u8[65536]{0}', space=vmem, size = 0x10000, scoped, tag = 'input window, operand 3, single buffered']
    #allocation8 [shape = 'u8[131072]{0}', space=vmem, size = 0x20000, scoped, tag = 'input window, operand 5, single buffered']
    #allocation9 [shape = 's32[1]{0}', space=sflag, size = 0x4, scoped, tag = 'scoped memory for tpu_custom_call.1']
    #allocation10 [shape = 'u8[8192]{0}', space=vmem, size = 0x2000, scoped, tag = 'output window, operand 0, single buffered']
    %12 = vsyncpa [#allocation3], 0
    %13 = vsyncpa [#allocation6], 0
    %14 = vsyncpa [#allocation9], 0
    %15 = vsyncpa [#allocation4], 0
    // Predicated region
    $region2: #{tpu_custom_call.1} parent=1 // pred_check
      _
    $region3: #{tpu_custom_call.1} parent=1 // pred_check_branch
      %17 = sbr.rel (0) target = $region5
    $region4: #{tpu_custom_call.1} parent=1 // pred_region
      %s19 = ssub.s32 128, 128
      %20 = vsyncadd [#allocation3], %s19
      %s22 = sshll.u32 [#allocation2], 4
      %s23 = int_to_ptr.vmem [resolvable:$true] %s22
      %25 = dma.hbm_to_vmem [thread:$0]  %s0, 128, %s23, [#allocation3]
    $region5: #{tpu_custom_call.1} parent=1 // pred_fallthru
      _
    // Predicated region
    $region6: #{tpu_custom_call.1} parent=1 // pred_check
      _
    $region7: #{tpu_custom_call.1} parent=1 // pred_check_branch
      %27 = sbr.rel (0) target = $region9
    $region8: #{tpu_custom_call.1} parent=1 // pred_region
      %s29 = ssub.s32 512, 512
      %30 = vsyncadd [#allocation6], %s29
      %s31 = sshll.u32 [#allocation5], 4
      %s32 = int_to_ptr.vmem [resolvable:$true] %s31
      %37 = dma.hbm_to_vmem [thread:$0]  %s1, 512, %s32, [#allocation6], 128, 128, 8
    $region9: #{tpu_custom_call.1} parent=1 // pred_fallthru
      _
    // Predicated region
    $region10: #{tpu_custom_call.1} parent=1 // pred_check
      _
    $region11: #{tpu_custom_call.1} parent=1 // pred_check_branch
      %39 = sbr.rel (0) target = $region13
    $region12: #{tpu_custom_call.1} parent=1 // pred_region
      _
    $region13: #{tpu_custom_call.1} parent=1 // pred_fallthru
      _
    // Predicated region
    $region14: #{tpu_custom_call.1} parent=1 // pred_check
      _
    $region15: #{tpu_custom_call.1} parent=1 // pred_check_branch
      %41 = sbr.rel (0) target = $region17
    $region16: #{tpu_custom_call.1} parent=1 // pred_region
      %s43 = ssub.s32 2048, 2048
      %44 = vsyncadd [#allocation6], %s43
      %s45 = sshll.u32 [#allocation7], 4
      %s46 = int_to_ptr.vmem [resolvable:$true] %s45
      %51 = dma.hbm_to_vmem [thread:$0]  %s3, 2048, %s46, [#allocation6], 128, 128, 8
    $region17: #{tpu_custom_call.1} parent=1 // pred_fallthru
      _
    // Predicated region
    $region18: #{tpu_custom_call.1} parent=1 // pred_check
      _
    $region19: #{tpu_custom_call.1} parent=1 // pred_check_branch
      %53 = sbr.rel (0) target = $region21
    $region20: #{tpu_custom_call.1} parent=1 // pred_region
      _
    $region21: #{tpu_custom_call.1} parent=1 // pred_fallthru
      _
    // Predicated region
    $region22: #{tpu_custom_call.1} parent=1 // pred_check
      _
    $region23: #{tpu_custom_call.1} parent=1 // pred_check_branch
      %55 = sbr.rel (0) target = $region25
    $region24: #{tpu_custom_call.1} parent=1 // pred_region
      %s57 = ssub.s32 4096, 4096
      %58 = vsyncadd [#allocation9], %s57
      %s59 = sshll.u32 [#allocation8], 4
      %s60 = int_to_ptr.vmem [resolvable:$true] %s59
      %65 = dma.hbm_to_vmem [thread:$0]  %s5, 4096, %s60, [#allocation9], 256, 256, 16
    $region25: #{tpu_custom_call.1} parent=1 // pred_fallthru
      _
    // Predicated region
    $region26: #{tpu_custom_call.1} parent=1 // pred_check
      _
    $region27: #{tpu_custom_call.1} parent=1 // pred_check_branch
      %67 = sbr.rel (0) target = $region29
    $region28: #{tpu_custom_call.1} parent=1 // pred_region
      _
    $region29: #{tpu_custom_call.1} parent=1 // pred_fallthru
      _
    // Predicated region
    $region30: #{tpu_custom_call.1} parent=1 // pred_check
      _
    $region31: #{tpu_custom_call.1} parent=1 // pred_check_branch
      %69 = sbr.rel (0) target = $region33
    $region32: #{tpu_custom_call.1} parent=1 // pred_region
      %70 = dma.done [#allocation3], 128
    $region33: #{tpu_custom_call.1} parent=1 // pred_fallthru
      _
    // Predicated region
    $region34: #{tpu_custom_call.1} parent=1 // pred_check
      _
    $region35: #{tpu_custom_call.1} parent=1 // pred_check_branch
      %72 = sbr.rel (0) target = $region37
    $region36: #{tpu_custom_call.1} parent=1 // pred_region
      %73 = dma.done [#allocation6], 512
    $region37: #{tpu_custom_call.1} parent=1 // pred_fallthru
      _
    // Predicated region
    $region38: #{tpu_custom_call.1} parent=1 // pred_check
      _
    $region39: #{tpu_custom_call.1} parent=1 // pred_check_branch
      %75 = sbr.rel (0) target = $region41
    $region40: #{tpu_custom_call.1} parent=1 // pred_region
      %76 = dma.done [#allocation6], 2048
    $region41: #{tpu_custom_call.1} parent=1 // pred_fallthru
      _
    // Predicated region
    $region42: #{tpu_custom_call.1} parent=1 // pred_check
      _
    $region43: #{tpu_custom_call.1} parent=1 // pred_check_branch
      %78 = sbr.rel (0) target = $region45
    $region44: #{tpu_custom_call.1} parent=1 // pred_region
      %79 = dma.done [#allocation9], 4096
    $region45: #{tpu_custom_call.1} parent=1 // pred_fallthru
      _
    %v80 = vld [vmem:[#allocation2] sm:$0xff]
    %v81 = vld [vmem:[#allocation5] sm:$0xff]
    %v82 = vld [vmem:[#allocation5 + $0x8] sm:$0xff]
    %v83 = vld [vmem:[#allocation5 + $0x10] sm:$0xff]
    %v84 = vld [vmem:[#allocation5 + $0x18] sm:$0xff]
    %v85 = vld [vmem:[%s2] sm:$0x1]
    %v87 = vlaneseq
    %v88 = vshrl.u32 %v87, 7
    %v89 = vsub.s32 0, %v88
    %v90 = vrot.slane %v85, %v89
    %vm92 = vcmask 261120
    %v94 = vsel %vm92, %v80, 0
    %96 = vmatprep.subr.mxu0 0.0
    %97 = vmatpush1.msra.mxu0 %v81
    %98 = vmatprep.subr.mxu0 0.0
    %99 = vmatpush1.msra.mxu0 %v82
    %100 = vmatprep.subr.mxu0 0.0
    %101 = vmatpush1.msra.mxu0 %v83
    %102 = vmatprep.subr.mxu0 0.0
    %103 = vmatpush1.msra.mxu0 %v84
    %104 = vmatprep.subr.mxu0 0.0
    %105 = vmatpush1.msra.mxu0 0.0
    %106 = vmatprep.subr.mxu0 0.0
    %107 = vmatpush1.msra.mxu0 0.0
    %108 = vmatprep.subr.mxu0 0.0
    %109 = vmatpush1.msra.mxu0 0.0
    %110 = vmatprep.subr.mxu0 0.0
    %111 = vmatpush1.msra.mxu0 0.0
    %112 = vmatprep.subr.mxu0 0.0
    %113 = vmatpush1.msra.mxu0 0.0
    %114 = vmatprep.subr.mxu0 0.0
    %115 = vmatpush1.msra.mxu0 0.0
    %116 = vmatprep.subr.mxu0 0.0
    %117 = vmatpush1.msra.mxu0 0.0
    %118 = vmatprep.subr.mxu0 0.0
    %119 = vmatpush1.msra.mxu0 0.0
    %120 = vmatprep.subr.mxu0 0.0
    %121 = vmatpush1.msra.mxu0 0.0
    %122 = vmatprep.subr.mxu0 0.0
    %123 = vmatpush1.msra.mxu0 0.0
    %124 = vmatprep.subr.mxu0 0.0
    %125 = vmatpush1.msra.mxu0 0.0
    %126 = vmatprep.subr.mxu0 0.0
    %127 = vmatpush1.msra.mxu0 0.0
    %128 = vmatprep.subr.mxu0 0.0
    %129 = vmatpush1.msra.mxu0 0.0
    %130 = vmatprep.subr.mxu0 0.0
    %131 = vmatpush1.msra.mxu0 0.0
    %132 = vmatprep.subr.mxu0 0.0
    %133 = vmatpush1.msra.mxu0 0.0
    %134 = vmatprep.subr.mxu0 0.0
    %135 = vmatpush1.msra.mxu0 0.0
    %136 = vmatprep.subr.mxu0 0.0
    %137 = vmatpush1.msra.mxu0 0.0
    %138 = vmatprep.subr.mxu0 0.0
    %139 = vmatpush1.msra.mxu0 0.0
    %140 = vmatprep.subr.mxu0 0.0
    %141 = vmatpush1.msra.mxu0 0.0
    %142 = vmatprep.subr.mxu0 0.0
    %143 = vmatpush1.msra.mxu0 0.0
    %144 = vmatprep.subr.mxu0 0.0
    %145 = vmatpush1.msra.mxu0 0.0
    %146 = vmatprep.subr.mxu0 0.0
    %147 = vmatpush1.msra.mxu0 0.0
    %148 = vmatprep.subr.mxu0 0.0
    %149 = vmatpush1.msra.mxu0 0.0
    %150 = vmatprep.subr.mxu0 0.0
    %151 = vmatpush1.msra.mxu0 0.0
    %152 = vmatprep.subr.mxu0 0.0
    %153 = vmatpush1.msra.mxu0 0.0
    %154 = vmatprep.subr.mxu0 0.0
    %155 = vmatpush1.msra.mxu0 0.0
    %156 = vmatprep.subr.mxu0 0.0
    %157 = vmatpush1.msra.mxu0 0.0
    %158 = vmatprep.subr.mxu0 0.0
    %159 = vmatpush1.msra.mxu0 0.0
    %160 = vmatprep.mubr.f32.mxu0 0.0
    %161 = vmatmul.mubr.f32.gmra.mrb[0].mxu0 %v94
    %v162 = vpop.f32.mrb[0].mxu0
    %v163 = vadd.f32 %v90, %v162
    %v164 = vpop.f32.mrb[0].mxu0
    %165 = vdwg.mxu0
    %v166 = vmax.f32 %v163, 0.0
    %v167 = vld [vmem:[#allocation7] sm:$0xff]
    %v168 = vld [vmem:[#allocation7 + $0x8] sm:$0xff]
    %v169 = vld [vmem:[#allocation7 + $0x10] sm:$0xff]
    %v170 = vld [vmem:[#allocation7 + $0x18] sm:$0xff]
    %v171 = vld [vmem:[#allocation7 + $0x20] sm:$0xff]
    %v172 = vld [vmem:[#allocation7 + $0x28] sm:$0xff]
    %v173 = vld [vmem:[#allocation7 + $0x30] sm:$0xff]
    %v174 = vld [vmem:[#allocation7 + $0x38] sm:$0xff]
    %v175 = vld [vmem:[#allocation7 + $0x40] sm:$0xff]
    %v176 = vld [vmem:[#allocation7 + $0x48] sm:$0xff]
    %v177 = vld [vmem:[#allocation7 + $0x50] sm:$0xff]
    %v178 = vld [vmem:[#allocation7 + $0x58] sm:$0xff]
    %v179 = vld [vmem:[#allocation7 + $0x60] sm:$0xff]
    %v180 = vld [vmem:[#allocation7 + $0x68] sm:$0xff]
    %v181 = vld [vmem:[#allocation7 + $0x70] sm:$0xff]
    %v182 = vld [vmem:[#allocation7 + $0x78] sm:$0xff]
    %v183 = vld [vmem:[%s4] sm:$0x1]
    %v185 = vlaneseq
    %v186 = vshrl.u32 %v185, 7
    %v187 = vsub.s32 0, %v186
    %v188 = vrot.slane %v183, %v187
    %190 = vmatprep.subr.mxu0 0.0
    %191 = vmatpush1.msra.mxu0 %v167
    %192 = vmatprep.subr.mxu0 0.0
    %193 = vmatpush1.msra.mxu0 %v168
    %194 = vmatprep.subr.mxu0 0.0
    %195 = vmatpush1.msra.mxu0 %v169
    %196 = vmatprep.subr.mxu0 0.0
    %197 = vmatpush1.msra.mxu0 %v170
    %198 = vmatprep.subr.mxu0 0.0
    %199 = vmatpush1.msra.mxu0 %v171
    %200 = vmatprep.subr.mxu0 0.0
    %201 = vmatpush1.msra.mxu0 %v172
    %202 = vmatprep.subr.mxu0 0.0
    %203 = vmatpush1.msra.mxu0 %v173
    %204 = vmatprep.subr.mxu0 0.0
    %205 = vmatpush1.msra.mxu0 %v174
    %206 = vmatprep.subr.mxu0 0.0
    %207 = vmatpush1.msra.mxu0 %v175
    %208 = vmatprep.subr.mxu0 0.0
    %209 = vmatpush1.msra.mxu0 %v176
    %210 = vmatprep.subr.mxu0 0.0
    %211 = vmatpush1.msra.mxu0 %v177
    %212 = vmatprep.subr.mxu0 0.0
    %213 = vmatpush1.msra.mxu0 %v178
    %214 = vmatprep.subr.mxu0 0.0
    %215 = vmatpush1.msra.mxu0 %v179
    %216 = vmatprep.subr.mxu0 0.0
    %217 = vmatpush1.msra.mxu0 %v180
    %218 = vmatprep.subr.mxu0 0.0
    %219 = vmatpush1.msra.mxu0 %v181
    %220 = vmatprep.subr.mxu0 0.0
    %221 = vmatpush1.msra.mxu0 %v182
    %222 = vmatprep.subr.mxu0 0.0
    %223 = vmatpush1.msra.mxu0 0.0
    %224 = vmatprep.subr.mxu0 0.0
    %225 = vmatpush1.msra.mxu0 0.0
    %226 = vmatprep.subr.mxu0 0.0
    %227 = vmatpush1.msra.mxu0 0.0
    %228 = vmatprep.subr.mxu0 0.0
    %229 = vmatpush1.msra.mxu0 0.0
    %230 = vmatprep.subr.mxu0 0.0
    %231 = vmatpush1.msra.mxu0 0.0
    %232 = vmatprep.subr.mxu0 0.0
    %233 = vmatpush1.msra.mxu0 0.0
    %234 = vmatprep.subr.mxu0 0.0
    %235 = vmatpush1.msra.mxu0 0.0
    %236 = vmatprep.subr.mxu0 0.0
    %237 = vmatpush1.msra.mxu0 0.0
    %238 = vmatprep.subr.mxu0 0.0
    %239 = vmatpush1.msra.mxu0 0.0
    %240 = vmatprep.subr.mxu0 0.0
    %241 = vmatpush1.msra.mxu0 0.0
    %242 = vmatprep.subr.mxu0 0.0
    %243 = vmatpush1.msra.mxu0 0.0
    %244 = vmatprep.subr.mxu0 0.0
    %245 = vmatpush1.msra.mxu0 0.0
    %246 = vmatprep.subr.mxu0 0.0
    %247 = vmatpush1.msra.mxu0 0.0
    %248 = vmatprep.subr.mxu0 0.0
    %249 = vmatpush1.msra.mxu0 0.0
    %250 = vmatprep.subr.mxu0 0.0
    %251 = vmatpush1.msra.mxu0 0.0
    %252 = vmatprep.subr.mxu0 0.0
    %253 = vmatpush1.msra.mxu0 0.0
    %254 = vmatprep.mubr.f32.mxu0 0.0
    %255 = vmatmul.mubr.f32.gmra.mrb[0].mxu0 %v166
    %v256 = vpop.f32.mrb[0].mxu0
    %v257 = vadd.f32 %v188, %v256
    %v258 = vpop.f32.mrb[0].mxu0
    %259 = vdwg.mxu0
    %v260 = vmax.f32 %v257, 0.0
    %v261 = vld [vmem:[#allocation8] sm:$0xff]
    %v262 = vld [vmem:[#allocation8 + $0x8] sm:$0xff]
    %v263 = vld [vmem:[#allocation8 + $0x10] sm:$0xff]
    %v264 = vld [vmem:[#allocation8 + $0x18] sm:$0xff]
    %v265 = vld [vmem:[#allocation8 + $0x20] sm:$0xff]
    %v266 = vld [vmem:[#allocation8 + $0x28] sm:$0xff]
    %v267 = vld [vmem:[#allocation8 + $0x30] sm:$0xff]
    %v268 = vld [vmem:[#allocation8 + $0x38] sm:$0xff]
    %v269 = vld [vmem:[#allocation8 + $0x40] sm:$0xff]
    %v270 = vld [vmem:[#allocation8 + $0x48] sm:$0xff]
    %v271 = vld [vmem:[#allocation8 + $0x50] sm:$0xff]
    %v272 = vld [vmem:[#allocation8 + $0x58] sm:$0xff]
    %v273 = vld [vmem:[#allocation8 + $0x60] sm:$0xff]
    %v274 = vld [vmem:[#allocation8 + $0x68] sm:$0xff]
    %v275 = vld [vmem:[#allocation8 + $0x70] sm:$0xff]
    %v276 = vld [vmem:[#allocation8 + $0x78] sm:$0xff]
    %v277 = vld [vmem:[#allocation8 + $0x80] sm:$0xff]
    %v278 = vld [vmem:[#allocation8 + $0x88] sm:$0xff]
    %v279 = vld [vmem:[#allocation8 + $0x90] sm:$0xff]
    %v280 = vld [vmem:[#allocation8 + $0x98] sm:$0xff]
    %v281 = vld [vmem:[#allocation8 + $0xa0] sm:$0xff]
    %v282 = vld [vmem:[#allocation8 + $0xa8] sm:$0xff]
    %v283 = vld [vmem:[#allocation8 + $0xb0] sm:$0xff]
    %v284 = vld [vmem:[#allocation8 + $0xb8] sm:$0xff]
    %v285 = vld [vmem:[#allocation8 + $0xc0] sm:$0xff]
    %v286 = vld [vmem:[#allocation8 + $0xc8] sm:$0xff]
    %v287 = vld [vmem:[#allocation8 + $0xd0] sm:$0xff]
    %v288 = vld [vmem:[#allocation8 + $0xd8] sm:$0xff]
    %v289 = vld [vmem:[#allocation8 + $0xe0] sm:$0xff]
    %v290 = vld [vmem:[#allocation8 + $0xe8] sm:$0xff]
    %v291 = vld [vmem:[#allocation8 + $0xf0] sm:$0xff]
    %v292 = vld [vmem:[#allocation8 + $0xf8] sm:$0xff]
    %v293 = vld [vmem:[%s6] sm:$0x3]
    %v295 = vlaneseq
    %v296 = vshrl.u32 %v295, 7
    %v297 = vsub.s32 0, %v296
    %v298 = vrot.slane %v293, %v297
    %v299 = vlaneseq
    %v300 = vshrl.u32 %v299, 7
    %v301 = vsub.s32 1, %v300
    %v302 = vrot.slane %v293, %v301
    %305 = vmatprep.subr.mxu0 %v262
    %306 = vmatpush1.msra.mxu0 %v261
    %307 = vmatprep.subr.mxu0 %v264
    %308 = vmatpush1.msra.mxu0 %v263
    %309 = vmatprep.subr.mxu0 %v266
    %310 = vmatpush1.msra.mxu0 %v265
    %311 = vmatprep.subr.mxu0 %v268
    %312 = vmatpush1.msra.mxu0 %v267
    %313 = vmatprep.subr.mxu0 %v270
    %314 = vmatpush1.msra.mxu0 %v269
    %315 = vmatprep.subr.mxu0 %v272
    %316 = vmatpush1.msra.mxu0 %v271
    %317 = vmatprep.subr.mxu0 %v274
    %318 = vmatpush1.msra.mxu0 %v273
    %319 = vmatprep.subr.mxu0 %v276
    %320 = vmatpush1.msra.mxu0 %v275
    %321 = vmatprep.subr.mxu0 %v278
    %322 = vmatpush1.msra.mxu0 %v277
    %323 = vmatprep.subr.mxu0 %v280
    %324 = vmatpush1.msra.mxu0 %v279
    %325 = vmatprep.subr.mxu0 %v282
    %326 = vmatpush1.msra.mxu0 %v281
    %327 = vmatprep.subr.mxu0 %v284
    %328 = vmatpush1.msra.mxu0 %v283
    %329 = vmatprep.subr.mxu0 %v286
    %330 = vmatpush1.msra.mxu0 %v285
    %331 = vmatprep.subr.mxu0 %v288
    %332 = vmatpush1.msra.mxu0 %v287
    %333 = vmatprep.subr.mxu0 %v290
    %334 = vmatpush1.msra.mxu0 %v289
    %335 = vmatprep.subr.mxu0 %v292
    %336 = vmatpush1.msra.mxu0 %v291
    %337 = vmatprep.subr.mxu0 0.0
    %338 = vmatpush1.msra.mxu0 0.0
    %339 = vmatprep.subr.mxu0 0.0
    %340 = vmatpush1.msra.mxu0 0.0
    %341 = vmatprep.subr.mxu0 0.0
    %342 = vmatpush1.msra.mxu0 0.0
    %343 = vmatprep.subr.mxu0 0.0
    %344 = vmatpush1.msra.mxu0 0.0
    %345 = vmatprep.subr.mxu0 0.0
    %346 = vmatpush1.msra.mxu0 0.0
    %347 = vmatprep.subr.mxu0 0.0
    %348 = vmatpush1.msra.mxu0 0.0
    %349 = vmatprep.subr.mxu0 0.0
    %350 = vmatpush1.msra.mxu0 0.0
    %351 = vmatprep.subr.mxu0 0.0
    %352 = vmatpush1.msra.mxu0 0.0
    %353 = vmatprep.subr.mxu0 0.0
    %354 = vmatpush1.msra.mxu0 0.0
    %355 = vmatprep.subr.mxu0 0.0
    %356 = vmatpush1.msra.mxu0 0.0
    %357 = vmatprep.subr.mxu0 0.0
    %358 = vmatpush1.msra.mxu0 0.0
    %359 = vmatprep.subr.mxu0 0.0
    %360 = vmatpush1.msra.mxu0 0.0
    %361 = vmatprep.subr.mxu0 0.0
    %362 = vmatpush1.msra.mxu0 0.0
    %363 = vmatprep.subr.mxu0 0.0
    %364 = vmatpush1.msra.mxu0 0.0
    %365 = vmatprep.subr.mxu0 0.0
    %366 = vmatpush1.msra.mxu0 0.0
    %367 = vmatprep.subr.mxu0 0.0
    %368 = vmatpush1.msra.mxu0 0.0
    %369 = vmatprep.mubr.f32.mxu0 0.0
    %370 = vmatmul.mubr.f32.gmra.mrb[0].mxu0 %v260
    %v371 = vpop.f32.mrb[0].mxu0
    %v372 = vadd.f32 %v298, %v371
    %v373 = vpop.f32.mrb[0].mxu0
    %v374 = vadd.f32 %v302, %v373
    %375 = vdwg.mxu0
    %376 = vst [vmem:[#allocation10] sm:$0xff] %v372
    %377 = vst [vmem:[#allocation10 + $0x8] sm:$0xff] %v374
    // Predicated region
    $region46: #{tpu_custom_call.1} parent=1 // pred_check
      _
    $region47: #{tpu_custom_call.1} parent=1 // pred_check_branch
      %379 = sbr.rel (0) target = $region49
    $region48: #{tpu_custom_call.1} parent=1 // pred_region
      %s381 = ssub.s32 256, 256
      %382 = vsyncadd [#allocation4], %s381
      %s384 = sshll.u32 [#allocation10], 4
      %s385 = int_to_ptr.vmem [resolvable:$true] %s384
      %387 = dma.vmem_to_hbm [thread:$0]  %s385, 256, %s7, [#allocation4]
    $region49: #{tpu_custom_call.1} parent=1 // pred_fallthru
      _
    // Predicated region
    $region50: #{tpu_custom_call.1} parent=1 // pred_check
      _
    $region51: #{tpu_custom_call.1} parent=1 // pred_check_branch
      %389 = sbr.rel (0) target = $region53
    $region52: #{tpu_custom_call.1} parent=1 // pred_region
      %390 = dma.done [#allocation4], 256
    $region53: #{tpu_custom_call.1} parent=1 // pred_fallthru
      _
    %391 = vsyncpa [#allocation3], 1
    %392 = vsyncpa [#allocation6], 1
    %393 = vsyncpa [#allocation9], 1
    %394 = vsyncpa [#allocation4], 1

</llo_original>
